<compile_context>
chip_gen: v7x
topology: tpu7x:2x2x1
jax: 0.10.0
libtpu: 0.0.40
codegen_flags: <defaults>
</compile_context>

<pallas_src>
from functools import partial
from typing import NamedTuple

import jax
import jax.numpy as jnp
from jax.experimental import pallas as pl
from jax.experimental.pallas import tpu as pltpu


def _round_up(x, m):
    return ((x + m - 1) // m) * m


def value_network_kernel(x_ref, w1_ref, b1_ref, w2t_ref, b2t_ref, ot_ref):
    # fc1: cast streamed state to bf16 in-kernel, f32 MXU accumulation,
    # bias add + ReLU in f32.
    x = x_ref[...].astype(jnp.bfloat16)
    h = jnp.dot(x, w1_ref[...], preferred_element_type=jnp.float32)
    h = jnp.maximum(h + b1_ref[...], 0.0)                 # b1 is (1, hidden)
    # fc2, transposed output: out_t[o, b] = sum_k w2t[o, k] * h[b, k]
    # (A @ B.T contraction pattern -> no XLU transpose of h).
    out_t = jax.lax.dot_general(
        w2t_ref[...], h.astype(jnp.bfloat16),
        dimension_numbers=(((1,), (1,)), ((), ())),
        preferred_element_type=jnp.float32)
    ot_ref[...] = (out_t + b2t_ref[...]).astype(ot_ref.dtype)   # b2t is (o_pad, 1)


class ValueNetworkParams(NamedTuple):
    w1_bf: jax.Array   # (input_dim, hidden) bf16
    b1_2d: jax.Array   # (1, hidden) f32
    w2t_bf: jax.Array  # (o_pad8, hidden) bf16 (rows >= output_dim are zero)
    b2t_2d: jax.Array  # (o_pad8, 1) f32


def prepare_params(w1, b1, w2, b2):
    """One-time parameter prep (hoisted out of the per-call hot path).
    w1: (input_dim, hidden); b1: (hidden,); w2: (hidden, output_dim); b2: (output_dim,)."""
    input_dim, hidden = w1.shape
    output_dim = w2.shape[1]
    o_pad = _round_up(max(output_dim, 1), 8)       # f32 sublane minimum, not 128 lanes
    w1_bf = w1.astype(jnp.bfloat16)
    b1_2d = b1.reshape(1, hidden).astype(jnp.float32)
    w2t_bf = jnp.pad(w2.T.astype(jnp.bfloat16), ((0, o_pad - output_dim), (0, 0)))
    b2t_2d = jnp.pad(b2.reshape(output_dim, 1).astype(jnp.float32),
                     ((0, o_pad - output_dim), (0, 0)))
    return ValueNetworkParams(w1_bf, b1_2d, w2t_bf, b2t_2d), output_dim


@partial(jax.jit, static_argnames=("output_dim", "tile_b"))
def value_network(state, params: ValueNetworkParams, *, output_dim, tile_b=2048):
    """state: (B, input_dim) f32. Returns (B, output_dim) value estimates."""
    w1_bf, b1_2d, w2t_bf, b2t_2d = params
    B, input_dim = state.shape
    hidden = w1_bf.shape[1]
    o_pad = w2t_bf.shape[0]

    # ---- batch tile selection -------------------------------------------
    if B <= 128:
        # Single tile: the output block equals the full (o_pad, b_pad) array,
        # so a lane dim < 128 is allowed.
        tile_b = _round_up(max(B, 8), 8)
    else:
        # Lane-dense (multiple-of-128) output tiles; cap so there are >= 2
        # grid steps for v7x's two TensorCores to shard across.
        tile_b = min(tile_b, _round_up(pl.cdiv(B, 2), 128))
        tile_b = _round_up(tile_b, 128)
    grid_b = pl.cdiv(B, tile_b)
    b_pad = grid_b * tile_b

    x = state
    if b_pad != B:
        x = jnp.pad(x, ((0, b_pad - B), (0, 0)))

    out_t_padded = pl.pallas_call(
        value_network_kernel,
        out_shape=jax.ShapeDtypeStruct((o_pad, b_pad), jnp.float32),
        grid_spec=pl.GridSpec(
            grid=(grid_b,),
            in_specs=[
                pl.BlockSpec((tile_b, input_dim), lambda i: (i, 0)),   # state tile (f32)
                pl.BlockSpec((input_dim, hidden), lambda i: (0, 0)),   # W1 (resident)
                pl.BlockSpec((1, hidden), lambda i: (0, 0)),           # b1 (resident)
                pl.BlockSpec((o_pad, hidden), lambda i: (0, 0)),       # W2^T (resident)
                pl.BlockSpec((o_pad, 1), lambda i: (0, 0)),            # b2^T (resident)
            ],
            out_specs=pl.BlockSpec((o_pad, tile_b), lambda i: (0, i)), # transposed out
        ),
        compiler_params=pltpu.CompilerParams(
            dimension_semantics=("parallel",)),
    )(x, w1_bf, b1_2d, w2t_bf, b2t_2d)

    # Tiny slice + transpose of the (output_dim, B) result in the wrapper.
    return out_t_padded[:output_dim, :B].T.astype(state.dtype)


def init_params(key, input_dim, output_dim, hidden=256):
    """Deterministic synthetic init (PyTorch-Linear-like uniform fan-in bounds)."""
    k1, k2, k3, k4 = jax.random.split(key, 4)
    bound1 = 1.0 / (input_dim ** 0.5)
    bound2 = 1.0 / (hidden ** 0.5)
    w1 = jax.random.uniform(k1, (input_dim, hidden), jnp.float32, -bound1, bound1)
    b1 = jax.random.uniform(k2, (hidden,), jnp.float32, -bound1, bound1)
    w2 = jax.random.uniform(k3, (hidden, output_dim), jnp.float32, -bound2, bound2)
    b2 = jax.random.uniform(k4, (output_dim,), jnp.float32, -bound2, bound2)
    return w1, b1, w2, b2


if __name__ == "__main__":
    key = jax.random.PRNGKey(0)
    k_params, k_state = jax.random.split(key)

    batch = 8
    input_dim = 32
    output_dim = 4

    w1, b1, w2, b2 = init_params(k_params, input_dim, output_dim)
    state = jax.random.normal(k_state, (batch, input_dim), jnp.float32)

    params, out_dim = prepare_params(w1, b1, w2, b2)   # one-time prep
    out = value_network(state, params, output_dim=out_dim)
    out = jax.block_until_ready(out)
    assert out.shape == (batch, output_dim)

    # Reference matching the kernel's bf16-operand / f32-accumulate math.
    xr = state.astype(jnp.bfloat16).astype(jnp.float32)
    w1r = w1.astype(jnp.bfloat16).astype(jnp.float32)
    w2r = w2.astype(jnp.bfloat16).astype(jnp.float32)
    h = jnp.maximum(xr @ w1r + b1, 0.0)
    ref = h.astype(jnp.bfloat16).astype(jnp.float32) @ w2r + b2
    assert jnp.allclose(out, ref, atol=2e-3, rtol=2e-3), "mismatch vs bf16 reference"

    # Loose sanity check against the pure-f32 math of the original module.
    ref_f32 = jnp.maximum(state @ w1 + b1, 0.0) @ w2 + b2
    assert jnp.allclose(out, ref_f32, atol=5e-2, rtol=5e-2), "mismatch vs f32 reference"

    print("KERNEL_OK")
</pallas_src>

<mosaic_0001>
module attributes {stable_mosaic.version = 11 : i64} {
  func.func @value_network_kernel(%arg0: i32, %arg1: memref<8x32xf32, #tpu.memory_space<vmem>>, %arg2: memref<32x256xbf16, #tpu.memory_space<vmem>>, %arg3: memref<1x256xf32, #tpu.memory_space<vmem>>, %arg4: memref<8x256xbf16, #tpu.memory_space<vmem>>, %arg5: memref<8x1xf32, #tpu.memory_space<vmem>>, %arg6: memref<8x8xf32, #tpu.memory_space<vmem>>) attributes {dimension_semantics = [#tpu.dimension_semantics<parallel>], iteration_bounds = array<i64: 1>, scalar_prefetch = 0 : i64, scratch_operands = 0 : i64, tpu.core_type = #tpu.core_type<tc>, window_params = [{transform_indices = @transform_0, window_bounds = array<i64: 8, 32>}, {pipeline_mode = #tpu.pipeline_mode<synchronous>, transform_indices = @transform_1, window_bounds = array<i64: 32, 256>}, {pipeline_mode = #tpu.pipeline_mode<synchronous>, transform_indices = @transform_2, window_bounds = array<i64: 1, 256>}, {pipeline_mode = #tpu.pipeline_mode<synchronous>, transform_indices = @transform_3, window_bounds = array<i64: 8, 256>}, {pipeline_mode = #tpu.pipeline_mode<synchronous>, transform_indices = @transform_4, window_bounds = array<i64: 8, 1>}, {transform_indices = @transform_5, window_bounds = array<i64: 8, 8>}]} {
    %c0 = arith.constant 0 : index
    %c0_0 = arith.constant 0 : index
    %0 = vector.load %arg1[%c0, %c0_0] : memref<8x32xf32, #tpu.memory_space<vmem>>, vector<8x32xf32>
    %1 = arith.truncf %0 : vector<8x32xf32> to vector<8x32xbf16>
    %c0_1 = arith.constant 0 : index
    %c0_2 = arith.constant 0 : index
    %2 = vector.load %arg2[%c0_1, %c0_2] : memref<32x256xbf16, #tpu.memory_space<vmem>>, vector<32x256xbf16>
    %cst = arith.constant dense<0.000000e+00> : vector<8x256xf32>
    %3 = tpu.matmul %1, %2, %cst {dimension_numbers = #tpu.dot_dimension_numbers<[1], [0], [0], [1], [0, 0, 1, 1], [], []>} : vector<8x32xbf16>, vector<32x256xbf16>, vector<8x256xf32> -> vector<8x256xf32>
    %c0_3 = arith.constant 0 : index
    %c0_4 = arith.constant 0 : index
    %4 = vector.load %arg3[%c0_3, %c0_4] : memref<1x256xf32, #tpu.memory_space<vmem>>, vector<1x256xf32>
    %5 = vector.broadcast %4 : vector<1x256xf32> to vector<8x256xf32>
    %6 = arith.addf %3, %5 : vector<8x256xf32>
    %cst_5 = arith.constant 0.000000e+00 : f32
    %7 = vector.broadcast %cst_5 : f32 to vector<8x256xf32>
    %8 = arith.maximumf %6, %7 : vector<8x256xf32>
    %c0_6 = arith.constant 0 : index
    %c0_7 = arith.constant 0 : index
    %9 = vector.load %arg4[%c0_6, %c0_7] : memref<8x256xbf16, #tpu.memory_space<vmem>>, vector<8x256xbf16>
    %10 = arith.truncf %8 : vector<8x256xf32> to vector<8x256xbf16>
    %cst_8 = arith.constant dense<0.000000e+00> : vector<8x8xf32>
    %11 = tpu.matmul %9, %10, %cst_8 {dimension_numbers = #tpu.dot_dimension_numbers<[1], [1], [0], [0], [0, 0, 1, 0], [], []>} : vector<8x256xbf16>, vector<8x256xbf16>, vector<8x8xf32> -> vector<8x8xf32>
    %c0_9 = arith.constant 0 : index
    %c0_10 = arith.constant 0 : index
    %12 = vector.load %arg5[%c0_9, %c0_10] : memref<8x1xf32, #tpu.memory_space<vmem>>, vector<8x1xf32>
    %13 = vector.broadcast %12 : vector<8x1xf32> to vector<8x8xf32>
    %14 = arith.addf %11, %13 : vector<8x8xf32>
    %c0_11 = arith.constant 0 : index
    %c0_12 = arith.constant 0 : index
    %15 = vector.load %arg6[%c0_11, %c0_12] : memref<8x8xf32, #tpu.memory_space<vmem>>, vector<8x8xf32>
    tpu.vector_store %arg6[%c0_11, %c0_12], %14 {strides = array<i32>} : memref<8x8xf32, #tpu.memory_space<vmem>>, vector<8x8xf32>,
    return
  }
  func.func @transform_0(%arg0: i32) -> (i32, i32) {
    %c0_i32 = arith.constant 0 : i32
    %c0_i32_0 = arith.constant 0 : i32
    return %arg0, %c0_i32 : i32, i32
  }
  func.func @transform_1(%arg0: i32) -> (i32, i32) {
    %c0_i32 = arith.constant 0 : i32
    %c0_i32_0 = arith.constant 0 : i32
    %c0_i32_1 = arith.constant 0 : i32
    return %c0_i32, %c0_i32_0 : i32, i32
  }
  func.func @transform_2(%arg0: i32) -> (i32, i32) {
    %c0_i32 = arith.constant 0 : i32
    %c0_i32_0 = arith.constant 0 : i32
    %c0_i32_1 = arith.constant 0 : i32
    return %c0_i32, %c0_i32_0 : i32, i32
  }
  func.func @transform_3(%arg0: i32) -> (i32, i32) {
    %c0_i32 = arith.constant 0 : i32
    %c0_i32_0 = arith.constant 0 : i32
    %c0_i32_1 = arith.constant 0 : i32
    return %c0_i32, %c0_i32_0 : i32, i32
  }
  func.func @transform_4(%arg0: i32) -> (i32, i32) {
    %c0_i32 = arith.constant 0 : i32
    %c0_i32_0 = arith.constant 0 : i32
    %c0_i32_1 = arith.constant 0 : i32
    return %c0_i32, %c0_i32_0 : i32, i32
  }
  func.func @transform_5(%arg0: i32) -> (i32, i32) {
    %c0_i32 = arith.constant 0 : i32
    %c0_i32_0 = arith.constant 0 : i32
    return %c0_i32, %arg0 : i32, i32
  }
}

</mosaic_0001>

<llo_original>
// kernel: value_network.1
$region0: #{value_network.1}
  #allocation0 [shape = 'u32[]', space=smem, size = 0x4, offset = 0x4, fixed_abs, tag = 'smem constant byte address 0x4 - core index']
  #allocation1 [shape = 'u32[144,128]{1,0:T(1,128)}', space=vmem, size = 0x12000, scoped, tag = 'internal scratch']
  %s0 = inlined_call_operand.vmem [shape: f32[8,32], index: 0, kind: input, shape index: {}]
  %s1 = inlined_call_operand.hbm [shape: bf16[32,256], index: 1, kind: input, shape index: {}]
  %s2 = inlined_call_operand.hbm [shape: f32[1,256], index: 2, kind: input, shape index: {}]
  %s3 = inlined_call_operand.vmem [shape: bf16[8,256], index: 3, kind: input, shape index: {}]
  %s4 = inlined_call_operand.vmem [shape: f32[8,1], index: 4, kind: input, shape index: {}]
  %s5 = inlined_call_operand.vmem [shape: f32[8,8], index: 5, kind: output, shape index: {}]
  %s6 = sld [smem:[#allocation0]]
  $region38: #{value_network.1} parent=0
    _
  %s8 = ssub.s32 1, %s6
  %s9 = scalar_select 0, %s8, %s6
  $region1: #{value_network.1} parent=0
    #allocation2 [shape = 'u8[16384]{0}', space=vmem, size = 0x4000, scoped, tag = 'input window, operand 1, single buffered']
    #allocation3 [shape = 's32[1]{0}', space=sflag, size = 0x4, scoped, tag = 'scoped memory for value_network.1']
    #allocation4 [shape = 'u8[1024]{0}', space=vmem, size = 0x400, scoped, tag = 'input window, operand 2, single buffered']
    #allocation5 [shape = 's32[1]{0}', space=sflag, size = 0x4, scoped, tag = 'scoped memory for value_network.1']
    %10 = vsyncpa [#allocation3], 0
    %11 = vsyncpa [#allocation5], 0
    // Predicated region
    $region2: #{value_network.1} parent=1 // pred_check
      _
    $region3: #{value_network.1} parent=1 // pred_check_branch
      %13 = sbr.rel (0) target = $region5
    $region4: #{value_network.1} parent=1 // pred_region
      _
    $region5: #{value_network.1} parent=1 // pred_fallthru
      _
    // Predicated region
    $region6: #{value_network.1} parent=1 // pred_check
      _
    $region7: #{value_network.1} parent=1 // pred_check_branch
      %15 = sbr.rel (0) target = $region9
    $region8: #{value_network.1} parent=1 // pred_region
      %s17 = ssub.s32 512, 512
      %18 = vsyncadd [#allocation3], %s17
      %s19 = sshll.u32 [#allocation2], 4
      %s20 = int_to_ptr.vmem [resolvable:$true] %s19
      %25 = dma.hbm_to_vmem [thread:$0]  %s1, 512, %s20, [#allocation3], 128, 128, 8
    $region9: #{value_network.1} parent=1 // pred_fallthru
      _
    // Predicated region
    $region10: #{value_network.1} parent=1 // pred_check
      _
    $region11: #{value_network.1} parent=1 // pred_check_branch
      %27 = sbr.rel (0) target = $region13
    $region12: #{value_network.1} parent=1 // pred_region
      %s29 = ssub.s32 32, 32
      %30 = vsyncadd [#allocation5], %s29
      %s32 = sshll.u32 [#allocation4], 4
      %s33 = int_to_ptr.vmem [resolvable:$true] %s32
      %35 = dma.hbm_to_vmem [thread:$0]  %s2, 32, %s33, [#allocation5]
    $region13: #{value_network.1} parent=1 // pred_fallthru
      _
    // Predicated region
    $region14: #{value_network.1} parent=1 // pred_check
      _
    $region15: #{value_network.1} parent=1 // pred_check_branch
      %37 = sbr.rel (0) target = $region17
    $region16: #{value_network.1} parent=1 // pred_region
      _
    $region17: #{value_network.1} parent=1 // pred_fallthru
      _
    // Predicated region
    $region18: #{value_network.1} parent=1 // pred_check
      _
    $region19: #{value_network.1} parent=1 // pred_check_branch
      %39 = sbr.rel (0) target = $region21
    $region20: #{value_network.1} parent=1 // pred_region
      _
    $region21: #{value_network.1} parent=1 // pred_fallthru
      _
    // Predicated region
    $region22: #{value_network.1} parent=1 // pred_check
      _
    $region23: #{value_network.1} parent=1 // pred_check_branch
      %41 = sbr.rel (0) target = $region25
    $region24: #{value_network.1} parent=1 // pred_region
      %42 = dma.done [#allocation3], 512
    $region25: #{value_network.1} parent=1 // pred_fallthru
      _
    // Predicated region
    $region26: #{value_network.1} parent=1 // pred_check
      _
    $region27: #{value_network.1} parent=1 // pred_check_branch
      %44 = sbr.rel (0) target = $region29
    $region28: #{value_network.1} parent=1 // pred_region
      %45 = dma.done [#allocation5], 32
    $region29: #{value_network.1} parent=1 // pred_fallthru
      _
    %v47 = vld [vmem:[%s0] sm:$0xff]
    %v48 = vpack.c.bf16 %v47, %v47
    %v49 = vld [vmem:[#allocation2] sm:$0xff]
    %v50 = vld [vmem:[#allocation2 + $0x8] sm:$0xff]
    %v51 = vld [vmem:[#allocation2 + $0x10] sm:$0xff]
    %v52 = vld [vmem:[#allocation2 + $0x18] sm:$0xff]
    %v53 = vld [vmem:[#allocation4] sm:$0x3]
    %v55 = vlaneseq
    %v56 = vshrl.u32 %v55, 7
    %v57 = vsub.s32 0, %v56
    %v58 = vrot.slane %v53, %v57
    %v59 = vlaneseq
    %v60 = vshrl.u32 %v59, 7
    %v61 = vsub.s32 1, %v60
    %v62 = vrot.slane %v53, %v61
    %v69 = vunpack.c.l.b16 %v49
    %v70 = vunpack.c.h.b16 %v49
    %v71 = vunpack.c.l.b16 %v50
    %v72 = vunpack.c.h.b16 %v50
    %v73 = vunpack.c.l.b16 %v51
    %v74 = vunpack.c.h.b16 %v51
    %v75 = vunpack.c.l.b16 %v52
    %v76 = vunpack.c.h.b16 %v52
    %v77 = vpack.c.b16 %v71, %v69
    %v78 = vpack.c.b16 %v72, %v70
    %v79 = vpack.c.b16 %v75, %v73
    %v80 = vpack.c.b16 %v76, %v74
    %vm85 = vcmask 261120
    %v87 = vsel %vm85, %v48, 0
    %89 = vmatprep.subr.bf16.mxu0 %v78
    %90 = vmatpush1.bf16.msra.mxu0 %v77
    %91 = vmatprep.subr.bf16.mxu0 %v80
    %92 = vmatpush1.bf16.msra.mxu0 %v79
    %93 = vmatprep.subr.bf16.mxu0 0
    %94 = vmatpush1.bf16.msra.mxu0 0
    %95 = vmatprep.subr.bf16.mxu0 0
    %96 = vmatpush1.bf16.msra.mxu0 0
    %97 = vmatprep.subr.bf16.mxu0 0
    %98 = vmatpush1.bf16.msra.mxu0 0
    %99 = vmatprep.subr.bf16.mxu0 0
    %100 = vmatpush1.bf16.msra.mxu0 0
    %101 = vmatprep.subr.bf16.mxu0 0
    %102 = vmatpush1.bf16.msra.mxu0 0
    %103 = vmatprep.subr.bf16.mxu0 0
    %104 = vmatpush1.bf16.msra.mxu0 0
    %105 = vmatprep.subr.bf16.mxu0 0
    %106 = vmatpush1.bf16.msra.mxu0 0
    %107 = vmatprep.subr.bf16.mxu0 0
    %108 = vmatpush1.bf16.msra.mxu0 0
    %109 = vmatprep.subr.bf16.mxu0 0
    %110 = vmatpush1.bf16.msra.mxu0 0
    %111 = vmatprep.subr.bf16.mxu0 0
    %112 = vmatpush1.bf16.msra.mxu0 0
    %113 = vmatprep.subr.bf16.mxu0 0
    %114 = vmatpush1.bf16.msra.mxu0 0
    %115 = vmatprep.subr.bf16.mxu0 0
    %116 = vmatpush1.bf16.msra.mxu0 0
    %117 = vmatprep.subr.bf16.mxu0 0
    %118 = vmatpush1.bf16.msra.mxu0 0
    %119 = vmatprep.subr.bf16.mxu0 0
    %120 = vmatpush1.bf16.msra.mxu0 0
    %121 = vmatprep.mubr.bf16.mxu0 0
    %122 = vmatmul.mubr.bf16.gmra.mrb[0].mxu0 %v87
    %v123 = vpop.f32.mrb[0].mxu0
    %v124 = vadd.f32 %v58, %v123
    %v125 = vpop.f32.mrb[0].mxu0
    %v126 = vadd.f32 %v62, %v125
    %v127 = vpop.f32.mrb[0].mxu0
    %v128 = vpop.f32.mrb[0].mxu0
    %129 = vdwg.mxu0
    %v130 = vmax.f32 %v124, 0.0
    %v131 = vmax.f32 %v126, 0.0
    %v132 = vld [vmem:[%s3] sm:$0xff]
    %v133 = vpack.c.bf16 %v130, %v130
    %v134 = vpack.c.bf16 %v131, %v131
    %v135 = vld [vmem:[%s4] sm:$0xff]
    %137 = vset.pattern.permute.xlu0 0
    %138 = vperm.xlu0 %137, %v135
    %v139 = vpop.permute.xlu0 %138
    %v142 = vunpack.c.l.b16 %v132
    %v143 = vunpack.c.h.b16 %v132
    %v144 = vpack.c.b16 %v142, %v142
    %v145 = vpack.c.b16 %v143, %v143
    %148 = vmatprep.subr.bf16.mxu0 %v134
    %149 = vmatpush1.bf16.xpose.msra.mxu0 %v133
    %150 = vmatprep.subr.bf16.mxu0 0
    %151 = vmatpush1.bf16.xpose.msra.mxu0 0
    %152 = vmatprep.subr.bf16.mxu0 0
    %153 = vmatpush1.bf16.xpose.msra.mxu0 0
    %154 = vmatprep.subr.bf16.mxu0 0
    %155 = vmatpush1.bf16.xpose.msra.mxu0 0
    %156 = vmatprep.subr.bf16.mxu0 0
    %157 = vmatpush1.bf16.xpose.msra.mxu0 0
    %158 = vmatprep.subr.bf16.mxu0 0
    %159 = vmatpush1.bf16.xpose.msra.mxu0 0
    %160 = vmatprep.subr.bf16.mxu0 0
    %161 = vmatpush1.bf16.xpose.msra.mxu0 0
    %162 = vmatprep.subr.bf16.mxu0 0
    %163 = vmatpush1.bf16.xpose.msra.mxu0 0
    %164 = vmatprep.subr.bf16.mxu0 0
    %165 = vmatpush1.bf16.xpose.msra.mxu0 0
    %166 = vmatprep.subr.bf16.mxu0 0
    %167 = vmatpush1.bf16.xpose.msra.mxu0 0
    %168 = vmatprep.subr.bf16.mxu0 0
    %169 = vmatpush1.bf16.xpose.msra.mxu0 0
    %170 = vmatprep.subr.bf16.mxu0 0
    %171 = vmatpush1.bf16.xpose.msra.mxu0 0
    %172 = vmatprep.subr.bf16.mxu0 0
    %173 = vmatpush1.bf16.xpose.msra.mxu0 0
    %174 = vmatprep.subr.bf16.mxu0 0
    %175 = vmatpush1.bf16.xpose.msra.mxu0 0
    %176 = vmatprep.subr.bf16.mxu0 0
    %177 = vmatpush1.bf16.xpose.msra.mxu0 0
    %178 = vmatprep.subr.bf16.mxu0 0
    %179 = vmatpush1.bf16.xpose.msra.mxu0 0
    %180 = vmatprep.mubr.bf16.mxu0 %v145
    %181 = vmatmul.mubr.bf16.gmra.mrb[0].mxu0 %v144
    %v182 = vpop.f32.mrb[0].mxu0
    %v183 = vadd.f32 %v139, %v182
    %v184 = vpop.f32.mrb[0].mxu0
    %v185 = vpop.f32.mrb[0].mxu0
    %v186 = vpop.f32.mrb[0].mxu0
    %187 = vdwg.mxu0
    %vm188 = vcmask 64512
    %189 = vst.msk [vmem:[%s5] sm:$0xff] %vm188, %v183
    // Predicated region
    $region30: #{value_network.1} parent=1 // pred_check
      _
    $region31: #{value_network.1} parent=1 // pred_check_branch
      %191 = sbr.rel (0) target = $region33
    $region32: #{value_network.1} parent=1 // pred_region
      _
    $region33: #{value_network.1} parent=1 // pred_fallthru
      _
    // Predicated region
    $region34: #{value_network.1} parent=1 // pred_check
      _
    $region35: #{value_network.1} parent=1 // pred_check_branch
      %193 = sbr.rel (0) target = $region37
    $region36: #{value_network.1} parent=1 // pred_region
      _
    $region37: #{value_network.1} parent=1 // pred_fallthru
      _
    %194 = vsyncpa [#allocation3], 1
    %195 = vsyncpa [#allocation5], 1

</llo_original>
